<compile_context>
chip_gen: v6e
topology: v6e:2x2x1
jax: 0.10.0
libtpu: 0.0.40
codegen_flags: <defaults>
</compile_context>

<pallas_src>
import math

import jax
import jax.numpy as jnp
from jax.experimental import pallas as pl
from jax.experimental.pallas import tpu as pltpu

LANE = 128
SUBLANE = 8


def _flatten_copy_kernel(x_ref, o_ref):
    # Pure identity copy of one lane/sublane-dense tile.
    o_ref[...] = x_ref[...]


def _sublane_multiple(itemsize):
    # Sub-32-bit dtypes pack along sublanes: one vreg holds 8*(4/itemsize) rows.
    # f32 -> 8, bf16/f16 -> 16, int8/fp8 -> 32.
    return max(SUBLANE, (4 * SUBLANE) // max(1, itemsize))


def _vmem_capacity_bytes():
    """Best-effort physical per-TensorCore VMEM; used to size blocks."""
    try:
        info = pltpu.get_tpu_info()
        cap = int(getattr(info, "vmem_capacity_bytes", 0))
        if cap > 0:
            return cap
    except Exception:
        pass
    return 64 * 1024 * 1024  # conservative default: v7x per-core VMEM


def _block_budget():
    """(per-operand block-byte target, scoped-VMEM limit) per TPU generation."""
    vmem = _vmem_capacity_bytes()
    if vmem >= 128 * 1024 * 1024:
        # v5e / v6e: 128 MiB physical VMEM.  Bigger blocks amortize the
        # ~0.35 us/grid-step overhead; double-buffered working set
        # (2 operands x 2 buffers = 4x block) = 32 MiB, under the 64 MiB limit.
        return 8 * 1024 * 1024, 64 * 1024 * 1024
    # v7x (64 MiB physical per TC) or unknown: cap blocks at 4 MiB and the
    # scoped limit at 32 MiB to leave headroom for compiler scratch.
    return 4 * 1024 * 1024, 32 * 1024 * 1024


def _lane_dense_view(n_elems, itemsize, sublane_mult, target_block_bytes):
    """Pick a fully lane-dense 2D view (R, L) of the flat element stream.

    L is a multiple of 128 dividing n_elems, so every tile has full-width
    (unmasked) stores regardless of the original B and D.  L is capped so
    at least `sublane_mult` rows fit in the per-operand block budget.
    Returns None when n_elems is not a multiple of 128 (fallback path).
    """
    if n_elems % LANE != 0:
        return None
    lanes_total = n_elems // LANE
    max_l = max(
        1, min(lanes_total, target_block_bytes // (LANE * itemsize * sublane_mult))
    )
    width_lanes = 1
    for cand in range(max_l, 0, -1):
        if lanes_total % cand == 0:
            width_lanes = cand
            break
    L = width_lanes * LANE
    return n_elems // L, L


def _pick_rows(R, L, itemsize, sublane_mult, target_block_bytes):
    rows_budget = max(1, target_block_bytes // (L * itemsize))
    if R <= rows_budget:
        return R
    return max(sublane_mult, (rows_budget // sublane_mult) * sublane_mult)


def _pick_tiles_2d(B, D, itemsize, sublane_mult, target_block_bytes):
    """Fallback (B, D) tiling when B*D is not a multiple of 128."""
    target_elems = max(sublane_mult * LANE, target_block_bytes // itemsize)
    if D <= target_elems:
        tile_d = D
    else:
        tile_d = max(LANE, (target_elems // LANE) * LANE)
    rows = max(1, target_elems // tile_d)
    if B <= rows:
        tile_b = B
    else:
        tile_b = min(B, max(sublane_mult, (rows // sublane_mult) * sublane_mult))
    return tile_b, tile_d


def flatten_forward(x, *, use_pallas_copy=True):
    """Pallas equivalent of Flatten.forward(x): (B, ...) -> (B, prod(...))."""
    B = x.shape[0]
    D = math.prod(x.shape[1:])
    n = B * D

    if not use_pallas_copy:
        # Recommended production path: contiguous flatten is metadata-only.
        return jnp.reshape(x, (B, D))

    itemsize = jnp.dtype(x.dtype).itemsize
    sublane_mult = _sublane_multiple(itemsize)
    target_block_bytes, vmem_limit_bytes = _block_budget()

    view = _lane_dense_view(n, itemsize, sublane_mult, target_block_bytes)
    if view is not None:
        # Flat (R, L) view of the element stream: every block spans the full
        # width L (contiguous HBM chunk, unmasked full-lane stores).
        R, L = view
        tile_r = _pick_rows(R, L, itemsize, sublane_mult, target_block_bytes)
        kernel_in = jnp.reshape(x, (R, L))  # metadata-only for contiguous input
        grid = (pl.cdiv(R, tile_r),)
        in_specs = [pl.BlockSpec((tile_r, L), lambda i: (i, 0))]
        out_specs = pl.BlockSpec((tile_r, L), lambda i: (i, 0))
        out_shape = jax.ShapeDtypeStruct((R, L), x.dtype)
        dim_sem = ("parallel",)
    else:
        # B*D not a multiple of 128: tile the (B, D) view directly; edge
        # blocks are masked (correct, slightly slower).
        kernel_in = jnp.reshape(x, (B, D))
        tile_b, tile_d = _pick_tiles_2d(
            B, D, itemsize, sublane_mult, target_block_bytes
        )
        grid = (pl.cdiv(B, tile_b), pl.cdiv(D, tile_d))
        in_specs = [pl.BlockSpec((tile_b, tile_d), lambda i, j: (i, j))]
        out_specs = pl.BlockSpec((tile_b, tile_d), lambda i, j: (i, j))
        out_shape = jax.ShapeDtypeStruct((B, D), x.dtype)
        dim_sem = ("parallel", "parallel")

    out = pl.pallas_call(
        _flatten_copy_kernel,
        out_shape=out_shape,
        grid=grid,
        in_specs=in_specs,
        out_specs=out_specs,
        # Identity copy with identical in/out index maps -> self-aliasing is
        # safe; avoids allocating a second B*D HBM buffer when the input is a
        # donated temporary inside a larger jit (XLA copies defensively
        # otherwise, preserving correctness).
        input_output_aliases={0: 0},
        compiler_params=pltpu.CompilerParams(
            # NOTE: on v7x, pltpu.CORE_PARALLEL on the row axis would split the
            # copy across both TensorCores; "parallel" is kept since it is safe
            # on every generation.
            dimension_semantics=dim_sem,
            vmem_limit_bytes=vmem_limit_bytes,
        ),
        cost_estimate=pl.CostEstimate(
            flops=0, transcendentals=0, bytes_accessed=2 * n * itemsize
        ),
    )(kernel_in)

    return jnp.reshape(out, (B, D))  # metadata-only


if __name__ == "__main__":
    key = jax.random.PRNGKey(0)
    shape = (2, 4, 16, 16)  # (B, C, H, W) feature-map-like input
    x = jax.random.normal(key, shape, dtype=jnp.float32)

    out = flatten_forward(x)
    out = jax.block_until_ready(out)

    # Reference (plain JAX) check of the forward semantics: tensor.view(B, -1).
    ref = jnp.reshape(x, (shape[0], -1))
    assert out.shape == ref.shape and out.dtype == ref.dtype
    assert jnp.array_equal(out, ref)

    print("KERNEL_OK")
</pallas_src>

<mosaic_0001>
module attributes {stable_mosaic.version = 11 : i64} {
  func.func @_flatten_copy_kernel(%arg0: i32, %arg1: memref<1x2048xf32, #tpu.memory_space<vmem>>, %arg2: memref<1x2048xf32, #tpu.memory_space<vmem>>) attributes {dimension_semantics = [#tpu.dimension_semantics<parallel>], iteration_bounds = array<i64: 1>, scalar_prefetch = 0 : i64, scratch_operands = 0 : i64, tpu.core_type = #tpu.core_type<tc>, window_params = [{transform_indices = @transform_0, window_bounds = array<i64: 1, 2048>}, {transform_indices = @transform_1, window_bounds = array<i64: 1, 2048>}]} {
    %c0 = arith.constant 0 : index
    %c0_0 = arith.constant 0 : index
    %0 = vector.load %arg1[%c0, %c0_0] : memref<1x2048xf32, #tpu.memory_space<vmem>>, vector<1x2048xf32>
    %c0_1 = arith.constant 0 : index
    %c0_2 = arith.constant 0 : index
    %1 = vector.load %arg2[%c0_1, %c0_2] : memref<1x2048xf32, #tpu.memory_space<vmem>>, vector<1x2048xf32>
    tpu.vector_store %arg2[%c0_1, %c0_2], %0 {strides = array<i32>} : memref<1x2048xf32, #tpu.memory_space<vmem>>, vector<1x2048xf32>,
    return
  }
  func.func @transform_0(%arg0: i32) -> (i32, i32) {
    %c0_i32 = arith.constant 0 : i32
    %c0_i32_0 = arith.constant 0 : i32
    return %arg0, %c0_i32 : i32, i32
  }
  func.func @transform_1(%arg0: i32) -> (i32, i32) {
    %c0_i32 = arith.constant 0 : i32
    %c0_i32_0 = arith.constant 0 : i32
    return %arg0, %c0_i32 : i32, i32
  }
}

</mosaic_0001>

<llo_original>
// kernel: tpu_custom_call.1
$region0: #{tpu_custom_call.1}
  #allocation0 [shape = 'u32[]', space=smem, size = 0x4, offset = 0x4, fixed_abs, tag = 'smem constant byte address 0x4 - core index']
  #allocation1 [shape = 'u32[144,128]{1,0:T(1,128)}', space=vmem, size = 0x12000, scoped, tag = 'internal scratch']
  %s0 = inlined_call_operand.hbm [shape: f32[1,2048], index: 0, kind: input, shape index: {}, may-alias: {0,1}]
  %s1 = inlined_call_operand.hbm [shape: f32[1,2048], index: 1, kind: output, shape index: {}, may-alias: {0,1}]
  %s2 = sld [smem:[#allocation0]]
  $region18: #{tpu_custom_call.1} parent=0
    _
  %s4 = ssub.s32 1, %s2
  %s5 = scalar_select 0, %s4, %s2
  $region1: #{tpu_custom_call.1} parent=0
    #allocation2 [shape = 'u8[8192]{0}', space=vmem, size = 0x2000, scoped, tag = 'input window, operand 0, single buffered']
    #allocation3 [shape = 's32[1]{0}', space=sflag, size = 0x4, scoped, tag = 'scoped memory for tpu_custom_call.1']
    #allocation4 [shape = 's32[1]{0}', space=sflag, size = 0x4, scoped, tag = 'scoped memory for tpu_custom_call.1']
    #allocation5 [shape = 'u8[8192]{0}', space=vmem, size = 0x2000, scoped, tag = 'output window, operand 0, single buffered']
    %6 = vsyncpa [#allocation3], 0
    %7 = vsyncpa [#allocation4], 0
    // Predicated region
    $region2: #{tpu_custom_call.1} parent=1 // pred_check
      _
    $region3: #{tpu_custom_call.1} parent=1 // pred_check_branch
      %9 = sbr.rel (0) target = $region5
    $region4: #{tpu_custom_call.1} parent=1 // pred_region
      %s11 = ssub.s32 256, 256
      %12 = vsyncadd [#allocation3], %s11
      %s14 = sshll.u32 [#allocation2], 4
      %s15 = int_to_ptr.vmem [resolvable:$true] %s14
      %17 = dma.hbm_to_vmem [thread:$0]  %s0, 256, %s15, [#allocation3]
    $region5: #{tpu_custom_call.1} parent=1 // pred_fallthru
      _
    // Predicated region
    $region6: #{tpu_custom_call.1} parent=1 // pred_check
      _
    $region7: #{tpu_custom_call.1} parent=1 // pred_check_branch
      %19 = sbr.rel (0) target = $region9
    $region8: #{tpu_custom_call.1} parent=1 // pred_region
      %20 = dma.done [#allocation3], 256
    $region9: #{tpu_custom_call.1} parent=1 // pred_fallthru
      _
    %v21 = vld [vmem:[#allocation2] sm:$0xff]
    %v22 = vld [vmem:[#allocation2 + $0x8] sm:$0xff]
    %23 = vst [vmem:[#allocation5] sm:$0xff] %v21
    %24 = vst [vmem:[#allocation5 + $0x8] sm:$0xff] %v22
    // Predicated region
    $region10: #{tpu_custom_call.1} parent=1 // pred_check
      _
    $region11: #{tpu_custom_call.1} parent=1 // pred_check_branch
      %26 = sbr.rel (0) target = $region13
    $region12: #{tpu_custom_call.1} parent=1 // pred_region
      %s28 = ssub.s32 256, 256
      %29 = vsyncadd [#allocation4], %s28
      %s31 = sshll.u32 [#allocation5], 4
      %s32 = int_to_ptr.vmem [resolvable:$true] %s31
      %34 = dma.vmem_to_hbm [thread:$0]  %s32, 256, %s1, [#allocation4]
    $region13: #{tpu_custom_call.1} parent=1 // pred_fallthru
      _
    // Predicated region
    $region14: #{tpu_custom_call.1} parent=1 // pred_check
      _
    $region15: #{tpu_custom_call.1} parent=1 // pred_check_branch
      %36 = sbr.rel (0) target = $region17
    $region16: #{tpu_custom_call.1} parent=1 // pred_region
      %37 = dma.done [#allocation4], 256
    $region17: #{tpu_custom_call.1} parent=1 // pred_fallthru
      _
    %38 = vsyncpa [#allocation3], 1
    %39 = vsyncpa [#allocation4], 1

</llo_original>
